<compile_context>
chip_gen: v7x
topology: tpu7x:2x2x1
jax: 0.10.0
libtpu: 0.0.40
codegen_flags: <defaults>
</compile_context>

<pallas_src>
import jax
import jax.numpy as jnp
from jax.experimental import pallas as pl
from jax.experimental.pallas import tpu as pltpu


def _round_up(n, m):
    return ((n + m - 1) // m) * m


def _cdiv(a, b):
    return -(-a // b)


def _log_softmax_store(logits, o_ref):
    # `shifted` is reused for exp() and the final store -> one subtract and one
    # live (tb, Cp) f32 temporary instead of two.
    shifted = logits - jnp.max(logits, axis=-1, keepdims=True)
    lse = jnp.log(jnp.sum(jnp.exp(shifted), axis=-1, keepdims=True))
    o_ref[...] = (shifted - lse).astype(o_ref.dtype)


def _fused_kernel(x_ref, w_ref, b_ref, o_ref):
    # x: (tb, Dk)  w: (Dk, Cp)  b: (1, Cp) f32  o: (tb, Cp)
    logits = jnp.dot(x_ref[...], w_ref[...],
                     preferred_element_type=jnp.float32) + b_ref[...]
    _log_softmax_store(logits, o_ref)


def _ktiled_kernel(x_ref, w_ref, b_ref, o_ref, acc_ref):
    # Contraction axis tiled over grid axis 1; acc_ref is the f32 accumulator.
    k = pl.program_id(1)

    @pl.when(k == 0)
    def _():
        acc_ref[...] = jnp.zeros_like(acc_ref)

    acc_ref[...] += jnp.dot(x_ref[...], w_ref[...],
                            preferred_element_type=jnp.float32)

    @pl.when(k == pl.num_programs(1) - 1)
    def _():
        _log_softmax_store(acc_ref[...] + b_ref[...], o_ref)


def _vmem_capacity_bytes():
    try:
        return int(pltpu.get_tpu_info().vmem_capacity_bytes)
    except Exception:
        return 64 * 1024 * 1024  # v7x-safe fallback (smallest current VMEM)


def linear_logsoftmax(x, w, b, *, block_b=512, compute_dtype=None,
                      vmem_budget_bytes=None):
    """Fused Linear + LogSoftmax(dim=1).

    x: (B, D), w: (D, C) (transposed vs. torch's (C, D) weight), b: (C,).
    compute_dtype: dtype fed to the MXU.  jnp.bfloat16 is recommended on all
        generations (v5e's MXU is bf16-native too); accumulation and the
        log-softmax epilogue stay f32.  Default keeps the PyTorch module's
        f32 numerics.
    """
    B, D = x.shape
    C = w.shape[1]
    out_dtype = x.dtype
    mx_dtype = (jnp.dtype(compute_dtype) if compute_dtype is not None
                else jnp.dtype(x.dtype))
    iz = mx_dtype.itemsize
    oz = jnp.dtype(out_dtype).itemsize

    # Generation-aware VMEM budget (~96 MiB usable on v5e/v6e, ~48 MiB on v7x).
    cap = _vmem_capacity_bytes()
    budget = (cap * 3) // 4 if vmem_budget_bytes is None else int(vmem_budget_bytes)
    vmem_limit = int(min(cap, budget + (16 << 20)))

    # Lane-dense padding of the contraction (D) and class (C) axes.
    Dp = _round_up(D, 128)
    Cp = _round_up(C, 128)
    B8 = _round_up(B, 8)

    def footprint(tb, tk, single_k):
        w_bufs = 1 if single_k else 2              # resident weight -> Buffered(1)
        return (w_bufs * tk * Cp * iz              # weight block(s)
                + Cp * 4                           # bias (resident, f32)
                + 2 * tb * tk * iz                 # double-buffered x tile
                + 2 * tb * Cp * oz                 # double-buffered out tile
                + (0 if single_k else tb * Cp * 4)  # f32 accumulator scratch
                + 2 * tb * Cp * 4)                 # in-kernel f32 temps (shifted/exp)

    # ---- batch tile: keep the MXU M dimension well fed (>= 256 if possible).
    tb = min(_round_up(block_b, 8), B8)
    tb_floor = min(256, tb)
    while tb > tb_floor and footprint(tb, Dp, True) > budget:
        tb = max(tb_floor, _round_up(tb // 2, 8))

    # ---- contraction tile: prefer a fully VMEM-resident weight, else tile K.
    if footprint(tb, Dp, True) <= budget:
        tk = Dp
    else:
        tk = Dp
        while tk > 128 and footprint(tb, tk, False) > budget:
            tk = max(128, _round_up(tk // 2, 128))
        while tb > 8 and footprint(tb, tk, False) > budget:
            tb = max(8, _round_up(tb // 2, 8))
        if footprint(tb, tk, False) > budget:
            # TODO(synk): online-logsumexp tiling over the class axis for very
            # large C (vocab-style heads); not needed for this module's shapes.
            raise NotImplementedError(
                "LINEAR_LOGSOFTMAX: class axis too large for the VMEM budget")

    # ---- bound batch over-padding (< 8 rows per grid step) and keep both
    #      TensorCores busy on v7x when the batch is large enough.
    nb = _cdiv(B8, tb)
    if nb == 1 and tb >= 512:
        nb = 2
    tb = _round_up(_cdiv(B8, nb), 8)
    Bp = nb * tb

    # ---- bound contraction over-padding.
    nk = _cdiv(Dp, tk)
    tk = _round_up(_cdiv(Dp, nk), 128)
    Dk = nk * tk
    use_fused = (nk == 1)

    # ---- pad / cast inputs only when actually needed.
    if (Bp, Dk) == (B, D):
        xp = x if x.dtype == mx_dtype else x.astype(mx_dtype)
    else:
        xp = jnp.zeros((Bp, Dk), mx_dtype).at[:B, :D].set(x.astype(mx_dtype))

    if (Dk, Cp) == (D, C):
        wp = w if w.dtype == mx_dtype else w.astype(mx_dtype)
    else:
        wp = jnp.zeros((Dk, Cp), mx_dtype).at[:D, :C].set(w.astype(mx_dtype))

    # Bias stays f32: the -1e30 sentinel on padded classes relies on f32 range.
    # (Casting it to bf16/fp16 would give -inf and NaNs in the epilogue.)
    if Cp == C:
        bp = b.astype(jnp.float32).reshape(1, Cp)
    else:
        bp = jnp.full((1, Cp), jnp.float32(-1e30), jnp.float32).at[0, :C].set(
            b.astype(jnp.float32))

    cost = pl.CostEstimate(
        flops=2 * Bp * Dk * Cp + 5 * Bp * Cp,
        transcendentals=Bp * Cp + Bp,
        bytes_accessed=Bp * Dk * iz + Dk * Cp * iz + Cp * 4 + Bp * Cp * oz,
    )

    def run(single_buffer_resident):
        resident = ({"pipeline_mode": pl.Buffered(1)}
                    if single_buffer_resident else {})
        if use_fused:
            grid = (nb,)
            in_specs = [
                pl.BlockSpec((tb, Dk), lambda i: (i, 0)),            # x: batch-tiled
                pl.BlockSpec((Dk, Cp), lambda i: (0, 0), **resident),  # w: resident
                pl.BlockSpec((1, Cp), lambda i: (0, 0), **resident),   # b: resident
            ]
            out_specs = pl.BlockSpec((tb, Cp), lambda i: (i, 0))
            scratch = []
            kernel = _fused_kernel
            dims = ("parallel",)
        else:
            grid = (nb, nk)
            in_specs = [
                pl.BlockSpec((tb, tk), lambda i, k: (i, k)),
                pl.BlockSpec((tk, Cp), lambda i, k: (k, 0)),
                pl.BlockSpec((1, Cp), lambda i, k: (0, 0), **resident),
            ]
            out_specs = pl.BlockSpec((tb, Cp), lambda i, k: (i, 0))
            scratch = [pltpu.VMEM((tb, Cp), jnp.float32)]
            kernel = _ktiled_kernel
            dims = ("parallel", "arbitrary")

        return pl.pallas_call(
            kernel,
            out_shape=jax.ShapeDtypeStruct((Bp, Cp), out_dtype),
            grid_spec=pltpu.PrefetchScalarGridSpec(
                num_scalar_prefetch=0,
                grid=grid,
                in_specs=in_specs,
                out_specs=out_specs,
                scratch_shapes=scratch,
            ),
            compiler_params=pltpu.CompilerParams(
                dimension_semantics=dims,
                vmem_limit_bytes=vmem_limit,
            ),
            cost_estimate=cost,
        )(xp, wp, bp)

    try:
        out = run(True)
    except Exception:
        # Fallback if this jax version rejects pl.Buffered(1) on resident operands.
        out = run(False)

    if (Bp, Cp) == (B, C):
        return out
    return out[:B, :C]


if __name__ == "__main__":
    # Small shapes consistent with the module: batch=8, input_dim=32, nclass=16.
    B, D, C = 8, 32, 16
    key = jax.random.PRNGKey(0)
    kx, kw, kb = jax.random.split(key, 3)

    x = jax.random.normal(kx, (B, D), dtype=jnp.float32)

    # Mimic nn.Linear's uniform(-1/sqrt(D), 1/sqrt(D)) init; PyTorch weight is
    # (C, D) -> stored transposed as (D, C) for the kernel layout.
    bound = 1.0 / (D ** 0.5)
    w = jax.random.uniform(kw, (D, C), minval=-bound, maxval=bound, dtype=jnp.float32)
    b = jax.random.uniform(kb, (C,), minval=-bound, maxval=bound, dtype=jnp.float32)

    ref = jax.nn.log_softmax(x @ w + b, axis=1)

    # f32 path (matches the PyTorch module's numerics).
    out = jax.block_until_ready(linear_logsoftmax(x, w, b))
    assert out.shape == (B, C) and out.dtype == x.dtype
    assert jnp.allclose(out, ref, atol=1e-5, rtol=1e-5)

    # bf16-fed MXU path; f32 accumulate + f32 log-softmax epilogue.
    out_bf16 = jax.block_until_ready(
        linear_logsoftmax(x, w, b, compute_dtype=jnp.bfloat16))
    assert out_bf16.shape == (B, C)
    assert jnp.allclose(out_bf16, ref, atol=1e-1, rtol=1e-1)

    # Exercise the K-tiled accumulator path by shrinking the VMEM budget so the
    # full weight block does not "fit" and the contraction axis gets tiled.
    D2 = 384
    x2 = jax.random.normal(kx, (B, D2), dtype=jnp.float32)
    w2 = jax.random.uniform(kw, (D2, C), minval=-bound, maxval=bound,
                            dtype=jnp.float32)
    ref2 = jax.nn.log_softmax(x2 @ w2 + b, axis=1)
    out2 = jax.block_until_ready(
        linear_logsoftmax(x2, w2, b, vmem_budget_bytes=200_000))
    assert out2.shape == (B, C)
    assert jnp.allclose(out2, ref2, atol=1e-4, rtol=1e-4)

    print("KERNEL_OK")
</pallas_src>

<mosaic_0001>
module attributes {stable_mosaic.version = 11 : i64} {
  func.func @_fused_kernel(%arg0: i32, %arg1: memref<8x128xf32, #tpu.memory_space<vmem>>, %arg2: memref<128x128xf32, #tpu.memory_space<vmem>>, %arg3: memref<1x128xf32, #tpu.memory_space<vmem>>, %arg4: memref<8x128xf32, #tpu.memory_space<vmem>>) attributes {dimension_semantics = [#tpu.dimension_semantics<parallel>], iteration_bounds = array<i64: 1>, scalar_prefetch = 0 : i64, scratch_operands = 0 : i64, tpu.core_type = #tpu.core_type<tc>, window_params = [{transform_indices = @transform_0, window_bounds = array<i64: 8, 128>}, {pipeline_mode = #tpu.pipeline_mode<synchronous>, transform_indices = @transform_1, window_bounds = array<i64: 128, 128>}, {pipeline_mode = #tpu.pipeline_mode<synchronous>, transform_indices = @transform_2, window_bounds = array<i64: 1, 128>}, {transform_indices = @transform_3, window_bounds = array<i64: 8, 128>}]} {
    %c0 = arith.constant 0 : index
    %c0_0 = arith.constant 0 : index
    %0 = vector.load %arg1[%c0, %c0_0] : memref<8x128xf32, #tpu.memory_space<vmem>>, vector<8x128xf32>
    %c0_1 = arith.constant 0 : index
    %c0_2 = arith.constant 0 : index
    %1 = vector.load %arg2[%c0_1, %c0_2] : memref<128x128xf32, #tpu.memory_space<vmem>>, vector<128x128xf32>
    %cst = arith.constant dense<0.000000e+00> : vector<8x128xf32>
    %2 = tpu.matmul %0, %1, %cst {dimension_numbers = #tpu.dot_dimension_numbers<[1], [0], [0], [1], [0, 0, 1, 1], [], []>} : vector<8x128xf32>, vector<128x128xf32>, vector<8x128xf32> -> vector<8x128xf32>
    %c0_3 = arith.constant 0 : index
    %c0_4 = arith.constant 0 : index
    %3 = vector.load %arg3[%c0_3, %c0_4] : memref<1x128xf32, #tpu.memory_space<vmem>>, vector<1x128xf32>
    %4 = vector.broadcast %3 : vector<1x128xf32> to vector<8x128xf32>
    %5 = arith.addf %2, %4 : vector<8x128xf32>
    %cst_5 = arith.constant dense<0xFF800000> : vector<8xf32>
    %6 = vector.multi_reduction <maximumf>, %5, %cst_5 [1] : vector<8x128xf32> to vector<8xf32>
    %7 = vector.shape_cast %6 : vector<8xf32> to vector<8x1xf32>
    %8 = vector.broadcast %7 : vector<8x1xf32> to vector<8x128xf32>
    %9 = arith.subf %5, %8 : vector<8x128xf32>
    %10 = math.exp %9 : vector<8x128xf32>
    %cst_6 = arith.constant dense<0.000000e+00> : vector<8xf32>
    %11 = vector.multi_reduction <add>, %10, %cst_6 [1] : vector<8x128xf32> to vector<8xf32>
    %12 = vector.shape_cast %11 : vector<8xf32> to vector<8x1xf32>
    %13 = math.log %12 : vector<8x1xf32>
    %14 = vector.broadcast %13 : vector<8x1xf32> to vector<8x128xf32>
    %15 = arith.subf %9, %14 : vector<8x128xf32>
    %c0_7 = arith.constant 0 : index
    %c0_8 = arith.constant 0 : index
    %16 = vector.load %arg4[%c0_7, %c0_8] : memref<8x128xf32, #tpu.memory_space<vmem>>, vector<8x128xf32>
    tpu.vector_store %arg4[%c0_7, %c0_8], %15 {strides = array<i32>} : memref<8x128xf32, #tpu.memory_space<vmem>>, vector<8x128xf32>,
    return
  }
  func.func @transform_0(%arg0: i32) -> (i32, i32) {
    %c0_i32 = arith.constant 0 : i32
    %c0_i32_0 = arith.constant 0 : i32
    return %arg0, %c0_i32 : i32, i32
  }
  func.func @transform_1(%arg0: i32) -> (i32, i32) {
    %c0_i32 = arith.constant 0 : i32
    %c0_i32_0 = arith.constant 0 : i32
    %c0_i32_1 = arith.constant 0 : i32
    return %c0_i32, %c0_i32_0 : i32, i32
  }
  func.func @transform_2(%arg0: i32) -> (i32, i32) {
    %c0_i32 = arith.constant 0 : i32
    %c0_i32_0 = arith.constant 0 : i32
    %c0_i32_1 = arith.constant 0 : i32
    return %c0_i32, %c0_i32_0 : i32, i32
  }
  func.func @transform_3(%arg0: i32) -> (i32, i32) {
    %c0_i32 = arith.constant 0 : i32
    %c0_i32_0 = arith.constant 0 : i32
    return %arg0, %c0_i32 : i32, i32
  }
}

module attributes {stable_mosaic.version = 11 : i64} {
  func.func @_fused_kernel(%arg0: i32, %arg1: memref<8x128xf32, #tpu.memory_space<vmem>>, %arg2: memref<128x128xf32, #tpu.memory_space<vmem>>, %arg3: memref<1x128xf32, #tpu.memory_space<vmem>>, %arg4: memref<8x128xf32, #tpu.memory_space<vmem>>) attributes {dimension_semantics = [#tpu.dimension_semantics<parallel>], iteration_bounds = array<i64: 1>, scalar_prefetch = 0 : i64, scratch_operands = 0 : i64, tpu.core_type = #tpu.core_type<tc>, window_params = [{transform_indices = @transform_0, window_bounds = array<i64: 8, 128>}, {pipeline_mode = #tpu.pipeline_mode<synchronous>, transform_indices = @transform_1, window_bounds = array<i64: 128, 128>}, {pipeline_mode = #tpu.pipeline_mode<synchronous>, transform_indices = @transform_2, window_bounds = array<i64: 1, 128>}, {transform_indices = @transform_3, window_bounds = array<i64: 8, 128>}]} {
    %c0 = arith.constant 0 : index
    %c0_0 = arith.constant 0 : index
    %0 = vector.load %arg1[%c0, %c0_0] : memref<8x128xf32, #tpu.memory_space<vmem>>, vector<8x128xf32>
    %c0_1 = arith.constant 0 : index
    %c0_2 = arith.constant 0 : index
    %1 = vector.load %arg2[%c0_1, %c0_2] : memref<128x128xf32, #tpu.memory_space<vmem>>, vector<128x128xf32>
    %cst = arith.constant dense<0.000000e+00> : vector<8x128xf32>
    %2 = tpu.matmul %0, %1, %cst {dimension_numbers = #tpu.dot_dimension_numbers<[1], [0], [0], [1], [0, 0, 1, 1], [], []>} : vector<8x128xf32>, vector<128x128xf32>, vector<8x128xf32> -> vector<8x128xf32>
    %c0_3 = arith.constant 0 : index
    %c0_4 = arith.constant 0 : index
    %3 = vector.load %arg3[%c0_3, %c0_4] : memref<1x128xf32, #tpu.memory_space<vmem>>, vector<1x128xf32>
    %4 = vector.broadcast %3 : vector<1x128xf32> to vector<8x128xf32>
    %5 = arith.addf %2, %4 : vector<8x128xf32>
    %cst_5 = arith.constant dense<0xFF800000> : vector<8xf32>
    %6 = vector.multi_reduction <maximumf>, %5, %cst_5 [1] : vector<8x128xf32> to vector<8xf32>
    %7 = vector.shape_cast %6 : vector<8xf32> to vector<8x1xf32>
    %8 = vector.broadcast %7 : vector<8x1xf32> to vector<8x128xf32>
    %9 = arith.subf %5, %8 : vector<8x128xf32>
    %10 = math.exp %9 : vector<8x128xf32>
    %cst_6 = arith.constant dense<0.000000e+00> : vector<8xf32>
    %11 = vector.multi_reduction <add>, %10, %cst_6 [1] : vector<8x128xf32> to vector<8xf32>
    %12 = vector.shape_cast %11 : vector<8xf32> to vector<8x1xf32>
    %13 = math.log %12 : vector<8x1xf32>
    %14 = vector.broadcast %13 : vector<8x1xf32> to vector<8x128xf32>
    %15 = arith.subf %9, %14 : vector<8x128xf32>
    %c0_7 = arith.constant 0 : index
    %c0_8 = arith.constant 0 : index
    %16 = vector.load %arg4[%c0_7, %c0_8] : memref<8x128xf32, #tpu.memory_space<vmem>>, vector<8x128xf32>
    tpu.vector_store %arg4[%c0_7, %c0_8], %15 {strides = array<i32>} : memref<8x128xf32, #tpu.memory_space<vmem>>, vector<8x128xf32>,
    return
  }
  func.func @transform_0(%arg0: i32) -> (i32, i32) {
    %c0_i32 = arith.constant 0 : i32
    %c0_i32_0 = arith.constant 0 : i32
    return %arg0, %c0_i32 : i32, i32
  }
  func.func @transform_1(%arg0: i32) -> (i32, i32) {
    %c0_i32 = arith.constant 0 : i32
    %c0_i32_0 = arith.constant 0 : i32
    %c0_i32_1 = arith.constant 0 : i32
    return %c0_i32, %c0_i32_0 : i32, i32
  }
  func.func @transform_2(%arg0: i32) -> (i32, i32) {
    %c0_i32 = arith.constant 0 : i32
    %c0_i32_0 = arith.constant 0 : i32
    %c0_i32_1 = arith.constant 0 : i32
    return %c0_i32, %c0_i32_0 : i32, i32
  }
  func.func @transform_3(%arg0: i32) -> (i32, i32) {
    %c0_i32 = arith.constant 0 : i32
    %c0_i32_0 = arith.constant 0 : i32
    return %arg0, %c0_i32 : i32, i32
  }
}

</mosaic_0001>

<llo_original>
// kernel: tpu_custom_call.1
$region0: #{tpu_custom_call.1}
  #allocation0 [shape = 'u32[]', space=smem, size = 0x4, offset = 0x4, fixed_abs, tag = 'smem constant byte address 0x4 - core index']
  #allocation1 [shape = 'u32[144,128]{1,0:T(1,128)}', space=vmem, size = 0x12000, scoped, tag = 'internal scratch']
  %s0 = inlined_call_operand.hbm [shape: f32[8,128], index: 0, kind: input, shape index: {}]
  %s1 = inlined_call_operand.hbm [shape: f32[128,128], index: 1, kind: input, shape index: {}]
  %s2 = inlined_call_operand.hbm [shape: f32[1,128], index: 2, kind: input, shape index: {}]
  %s3 = inlined_call_operand.hbm [shape: f32[8,128], index: 3, kind: output, shape index: {}]
  %s4 = sld [smem:[#allocation0]]
  $region34: #{tpu_custom_call.1} parent=0
    _
  %s6 = ssub.s32 1, %s4
  %s7 = scalar_select 0, %s6, %s4
  $region1: #{tpu_custom_call.1} parent=0
    #allocation2 [shape = 'u8[4096]{0}', space=vmem, size = 0x1000, scoped, tag = 'input window, operand 0, single buffered']
    #allocation3 [shape = 's32[1]{0}', space=sflag, size = 0x4, scoped, tag = 'scoped memory for tpu_custom_call.1']
    #allocation4 [shape = 's32[1]{0}', space=sflag, size = 0x4, scoped, tag = 'scoped memory for tpu_custom_call.1']
    #allocation5 [shape = 'u8[65536]{0}', space=vmem, size = 0x10000, scoped, tag = 'input window, operand 1, single buffered']
    #allocation6 [shape = 's32[1]{0}', space=sflag, size = 0x4, scoped, tag = 'scoped memory for tpu_custom_call.1']
    #allocation7 [shape = 'u8[512]{0}', space=vmem, size = 0x400, scoped, tag = 'input window, operand 2, single buffered']
    #allocation8 [shape = 'u8[4096]{0}', space=vmem, size = 0x1000, scoped, tag = 'output window, operand 0, single buffered']
    %8 = vsyncpa [#allocation3], 0
    %9 = vsyncpa [#allocation6], 0
    %10 = vsyncpa [#allocation4], 0
    // Predicated region
    $region2: #{tpu_custom_call.1} parent=1 // pred_check
      _
    $region3: #{tpu_custom_call.1} parent=1 // pred_check_branch
      %12 = sbr.rel (0) target = $region5
    $region4: #{tpu_custom_call.1} parent=1 // pred_region
      %s14 = ssub.s32 128, 128
      %15 = vsyncadd [#allocation3], %s14
      %s17 = sshll.u32 [#allocation2], 4
      %s18 = int_to_ptr.vmem [resolvable:$true] %s17
      %20 = dma.hbm_to_vmem [thread:$0]  %s0, 128, %s18, [#allocation3]
    $region5: #{tpu_custom_call.1} parent=1 // pred_fallthru
      _
    // Predicated region
    $region6: #{tpu_custom_call.1} parent=1 // pred_check
      _
    $region7: #{tpu_custom_call.1} parent=1 // pred_check_branch
      %22 = sbr.rel (0) target = $region9
    $region8: #{tpu_custom_call.1} parent=1 // pred_region
      %s24 = ssub.s32 2048, 2048
      %25 = vsyncadd [#allocation6], %s24
      %s26 = sshll.u32 [#allocation5], 4
      %s27 = int_to_ptr.vmem [resolvable:$true] %s26
      %32 = dma.hbm_to_vmem [thread:$0]  %s1, 2048, %s27, [#allocation6], 128, 128, 8
    $region9: #{tpu_custom_call.1} parent=1 // pred_fallthru
      _
    // Predicated region
    $region10: #{tpu_custom_call.1} parent=1 // pred_check
      _
    $region11: #{tpu_custom_call.1} parent=1 // pred_check_branch
      %34 = sbr.rel (0) target = $region13
    $region12: #{tpu_custom_call.1} parent=1 // pred_region
      %s36 = ssub.s32 16, 16
      %37 = vsyncadd [#allocation6], %s36
      %s39 = sshll.u32 [#allocation7], 4
      %s40 = int_to_ptr.vmem [resolvable:$true] %s39
      %42 = dma.hbm_to_vmem [thread:$0]  %s2, 16, %s40, [#allocation6]
    $region13: #{tpu_custom_call.1} parent=1 // pred_fallthru
      _
    // Predicated region
    $region14: #{tpu_custom_call.1} parent=1 // pred_check
      _
    $region15: #{tpu_custom_call.1} parent=1 // pred_check_branch
      %44 = sbr.rel (0) target = $region17
    $region16: #{tpu_custom_call.1} parent=1 // pred_region
      %45 = dma.done [#allocation3], 128
    $region17: #{tpu_custom_call.1} parent=1 // pred_fallthru
      _
    // Predicated region
    $region18: #{tpu_custom_call.1} parent=1 // pred_check
      _
    $region19: #{tpu_custom_call.1} parent=1 // pred_check_branch
      %47 = sbr.rel (0) target = $region21
    $region20: #{tpu_custom_call.1} parent=1 // pred_region
      %48 = dma.done [#allocation6], 2048
    $region21: #{tpu_custom_call.1} parent=1 // pred_fallthru
      _
    // Predicated region
    $region22: #{tpu_custom_call.1} parent=1 // pred_check
      _
    $region23: #{tpu_custom_call.1} parent=1 // pred_check_branch
      %50 = sbr.rel (0) target = $region25
    $region24: #{tpu_custom_call.1} parent=1 // pred_region
      %51 = dma.done [#allocation6], 16
    $region25: #{tpu_custom_call.1} parent=1 // pred_fallthru
      _
    %v52 = vld [vmem:[#allocation2] sm:$0xff]
    %v53 = vld [vmem:[#allocation5] sm:$0xff]
    %v54 = vld [vmem:[#allocation5 + $0x8] sm:$0xff]
    %v55 = vld [vmem:[#allocation5 + $0x10] sm:$0xff]
    %v56 = vld [vmem:[#allocation5 + $0x18] sm:$0xff]
    %v57 = vld [vmem:[#allocation5 + $0x20] sm:$0xff]
    %v58 = vld [vmem:[#allocation5 + $0x28] sm:$0xff]
    %v59 = vld [vmem:[#allocation5 + $0x30] sm:$0xff]
    %v60 = vld [vmem:[#allocation5 + $0x38] sm:$0xff]
    %v61 = vld [vmem:[#allocation5 + $0x40] sm:$0xff]
    %v62 = vld [vmem:[#allocation5 + $0x48] sm:$0xff]
    %v63 = vld [vmem:[#allocation5 + $0x50] sm:$0xff]
    %v64 = vld [vmem:[#allocation5 + $0x58] sm:$0xff]
    %v65 = vld [vmem:[#allocation5 + $0x60] sm:$0xff]
    %v66 = vld [vmem:[#allocation5 + $0x68] sm:$0xff]
    %v67 = vld [vmem:[#allocation5 + $0x70] sm:$0xff]
    %v68 = vld [vmem:[#allocation5 + $0x78] sm:$0xff]
    %v69 = vld [vmem:[#allocation7] sm:$0x1]
    %v71 = vlaneseq
    %v72 = vshrl.u32 %v71, 7
    %v73 = vsub.s32 0, %v72
    %v74 = vrot.slane %v69, %v73
    %76 = vmatprep.subr.mxu0 0.0
    %77 = vmatpush1.msra.mxu0 %v53
    %78 = vmatprep.subr.mxu0 0.0
    %79 = vmatpush1.msra.mxu0 %v54
    %80 = vmatprep.subr.mxu0 0.0
    %81 = vmatpush1.msra.mxu0 %v55
    %82 = vmatprep.subr.mxu0 0.0
    %83 = vmatpush1.msra.mxu0 %v56
    %84 = vmatprep.subr.mxu0 0.0
    %85 = vmatpush1.msra.mxu0 %v57
    %86 = vmatprep.subr.mxu0 0.0
    %87 = vmatpush1.msra.mxu0 %v58
    %88 = vmatprep.subr.mxu0 0.0
    %89 = vmatpush1.msra.mxu0 %v59
    %90 = vmatprep.subr.mxu0 0.0
    %91 = vmatpush1.msra.mxu0 %v60
    %92 = vmatprep.subr.mxu0 0.0
    %93 = vmatpush1.msra.mxu0 %v61
    %94 = vmatprep.subr.mxu0 0.0
    %95 = vmatpush1.msra.mxu0 %v62
    %96 = vmatprep.subr.mxu0 0.0
    %97 = vmatpush1.msra.mxu0 %v63
    %98 = vmatprep.subr.mxu0 0.0
    %99 = vmatpush1.msra.mxu0 %v64
    %100 = vmatprep.subr.mxu0 0.0
    %101 = vmatpush1.msra.mxu0 %v65
    %102 = vmatprep.subr.mxu0 0.0
    %103 = vmatpush1.msra.mxu0 %v66
    %104 = vmatprep.subr.mxu0 0.0
    %105 = vmatpush1.msra.mxu0 %v67
    %106 = vmatprep.subr.mxu0 0.0
    %107 = vmatpush1.msra.mxu0 %v68
    %108 = vmatprep.subr.mxu0 0.0
    %109 = vmatpush1.msra.mxu0 0.0
    %110 = vmatprep.subr.mxu0 0.0
    %111 = vmatpush1.msra.mxu0 0.0
    %112 = vmatprep.subr.mxu0 0.0
    %113 = vmatpush1.msra.mxu0 0.0
    %114 = vmatprep.subr.mxu0 0.0
    %115 = vmatpush1.msra.mxu0 0.0
    %116 = vmatprep.subr.mxu0 0.0
    %117 = vmatpush1.msra.mxu0 0.0
    %118 = vmatprep.subr.mxu0 0.0
    %119 = vmatpush1.msra.mxu0 0.0
    %120 = vmatprep.subr.mxu0 0.0
    %121 = vmatpush1.msra.mxu0 0.0
    %122 = vmatprep.subr.mxu0 0.0
    %123 = vmatpush1.msra.mxu0 0.0
    %124 = vmatprep.subr.mxu0 0.0
    %125 = vmatpush1.msra.mxu0 0.0
    %126 = vmatprep.subr.mxu0 0.0
    %127 = vmatpush1.msra.mxu0 0.0
    %128 = vmatprep.subr.mxu0 0.0
    %129 = vmatpush1.msra.mxu0 0.0
    %130 = vmatprep.subr.mxu0 0.0
    %131 = vmatpush1.msra.mxu0 0.0
    %132 = vmatprep.subr.mxu0 0.0
    %133 = vmatpush1.msra.mxu0 0.0
    %134 = vmatprep.subr.mxu0 0.0
    %135 = vmatpush1.msra.mxu0 0.0
    %136 = vmatprep.subr.mxu0 0.0
    %137 = vmatpush1.msra.mxu0 0.0
    %138 = vmatprep.subr.mxu0 0.0
    %139 = vmatpush1.msra.mxu0 0.0
    %140 = vmatprep.mubr.f32.mxu0 0.0
    %141 = vmatmul.mubr.f32.gmra.mrb[0].mxu0 %v52
    %v142 = vpop.f32.mrb[0].mxu0
    %v143 = vadd.f32 %v74, %v142
    %v144 = vpop.f32.mrb[0].mxu0
    %145 = vdwg.mxu0
    %146 = vmax.xlane.f32.xlu0 %v143
    %v147 = vpop.xlane.xlu0 %146
    %v148 = vsub.f32 %v143, %v147
    %v149 = vmul.f32 %v148, 1.442695
    %v150 = vpow.pop %v149
    %151 = vadd.xlane.f32.xlu0 %v150
    %v152 = vpop.xlane.xlu0 %151
    %v153 = vlog2.pop %v152
    %v154 = vmul.f32 %v153, 0.6931472
    %v155 = vsub.f32 %v148, %v154
    %156 = vst [vmem:[#allocation8] sm:$0xff] %v155
    // Predicated region
    $region26: #{tpu_custom_call.1} parent=1 // pred_check
      _
    $region27: #{tpu_custom_call.1} parent=1 // pred_check_branch
      %158 = sbr.rel (0) target = $region29
    $region28: #{tpu_custom_call.1} parent=1 // pred_region
      %s160 = ssub.s32 128, 128
      %161 = vsyncadd [#allocation4], %s160
      %s163 = sshll.u32 [#allocation8], 4
      %s164 = int_to_ptr.vmem [resolvable:$true] %s163
      %166 = dma.vmem_to_hbm [thread:$0]  %s164, 128, %s3, [#allocation4]
    $region29: #{tpu_custom_call.1} parent=1 // pred_fallthru
      _
    // Predicated region
    $region30: #{tpu_custom_call.1} parent=1 // pred_check
      _
    $region31: #{tpu_custom_call.1} parent=1 // pred_check_branch
      %168 = sbr.rel (0) target = $region33
    $region32: #{tpu_custom_call.1} parent=1 // pred_region
      %169 = dma.done [#allocation4], 128
    $region33: #{tpu_custom_call.1} parent=1 // pred_fallthru
      _
    %170 = vsyncpa [#allocation3], 1
    %171 = vsyncpa [#allocation6], 1
    %172 = vsyncpa [#allocation4], 1

// kernel: tpu_custom_call.1
$region0: #{tpu_custom_call.1}
  #allocation0 [shape = 'u32[]', space=smem, size = 0x4, offset = 0x4, fixed_abs, tag = 'smem constant byte address 0x4 - core index']
  #allocation1 [shape = 'u32[144,128]{1,0:T(1,128)}', space=vmem, size = 0x12000, scoped, tag = 'internal scratch']
  %s0 = inlined_call_operand.hbm [shape: f32[8,128], index: 0, kind: input, shape index: {}]
  %s1 = inlined_call_operand.hbm [shape: f32[128,128], index: 1, kind: input, shape index: {}]
  %s2 = inlined_call_operand.hbm [shape: f32[1,128], index: 2, kind: input, shape index: {}]
  %s3 = inlined_call_operand.hbm [shape: f32[8,128], index: 3, kind: output, shape index: {}]
  %s4 = sld [smem:[#allocation0]]
  $region34: #{tpu_custom_call.1} parent=0
    _
  %s6 = ssub.s32 1, %s4
  %s7 = scalar_select 0, %s6, %s4
  $region1: #{tpu_custom_call.1} parent=0
    #allocation2 [shape = 'u8[4096]{0}', space=vmem, size = 0x1000, scoped, tag = 'input window, operand 0, single buffered']
    #allocation3 [shape = 's32[1]{0}', space=sflag, size = 0x4, scoped, tag = 'scoped memory for tpu_custom_call.1']
    #allocation4 [shape = 's32[1]{0}', space=sflag, size = 0x4, scoped, tag = 'scoped memory for tpu_custom_call.1']
    #allocation5 [shape = 'u8[65536]{0}', space=vmem, size = 0x10000, scoped, tag = 'input window, operand 1, single buffered']
    #allocation6 [shape = 's32[1]{0}', space=sflag, size = 0x4, scoped, tag = 'scoped memory for tpu_custom_call.1']
    #allocation7 [shape = 'u8[512]{0}', space=vmem, size = 0x400, scoped, tag = 'input window, operand 2, single buffered']
    #allocation8 [shape = 'u8[4096]{0}', space=vmem, size = 0x1000, scoped, tag = 'output window, operand 0, single buffered']
    %8 = vsyncpa [#allocation3], 0
    %9 = vsyncpa [#allocation6], 0
    %10 = vsyncpa [#allocation4], 0
    // Predicated region
    $region2: #{tpu_custom_call.1} parent=1 // pred_check
      _
    $region3: #{tpu_custom_call.1} parent=1 // pred_check_branch
      %12 = sbr.rel (0) target = $region5
    $region4: #{tpu_custom_call.1} parent=1 // pred_region
      %s14 = ssub.s32 128, 128
      %15 = vsyncadd [#allocation3], %s14
      %s17 = sshll.u32 [#allocation2], 4
      %s18 = int_to_ptr.vmem [resolvable:$true] %s17
      %20 = dma.hbm_to_vmem [thread:$0]  %s0, 128, %s18, [#allocation3]
    $region5: #{tpu_custom_call.1} parent=1 // pred_fallthru
      _
    // Predicated region
    $region6: #{tpu_custom_call.1} parent=1 // pred_check
      _
    $region7: #{tpu_custom_call.1} parent=1 // pred_check_branch
      %22 = sbr.rel (0) target = $region9
    $region8: #{tpu_custom_call.1} parent=1 // pred_region
      %s24 = ssub.s32 2048, 2048
      %25 = vsyncadd [#allocation6], %s24
      %s26 = sshll.u32 [#allocation5], 4
      %s27 = int_to_ptr.vmem [resolvable:$true] %s26
      %32 = dma.hbm_to_vmem [thread:$0]  %s1, 2048, %s27, [#allocation6], 128, 128, 8
    $region9: #{tpu_custom_call.1} parent=1 // pred_fallthru
      _
    // Predicated region
    $region10: #{tpu_custom_call.1} parent=1 // pred_check
      _
    $region11: #{tpu_custom_call.1} parent=1 // pred_check_branch
      %34 = sbr.rel (0) target = $region13
    $region12: #{tpu_custom_call.1} parent=1 // pred_region
      %s36 = ssub.s32 16, 16
      %37 = vsyncadd [#allocation6], %s36
      %s39 = sshll.u32 [#allocation7], 4
      %s40 = int_to_ptr.vmem [resolvable:$true] %s39
      %42 = dma.hbm_to_vmem [thread:$0]  %s2, 16, %s40, [#allocation6]
    $region13: #{tpu_custom_call.1} parent=1 // pred_fallthru
      _
    // Predicated region
    $region14: #{tpu_custom_call.1} parent=1 // pred_check
      _
    $region15: #{tpu_custom_call.1} parent=1 // pred_check_branch
      %44 = sbr.rel (0) target = $region17
    $region16: #{tpu_custom_call.1} parent=1 // pred_region
      %45 = dma.done [#allocation3], 128
    $region17: #{tpu_custom_call.1} parent=1 // pred_fallthru
      _
    // Predicated region
    $region18: #{tpu_custom_call.1} parent=1 // pred_check
      _
    $region19: #{tpu_custom_call.1} parent=1 // pred_check_branch
      %47 = sbr.rel (0) target = $region21
    $region20: #{tpu_custom_call.1} parent=1 // pred_region
      %48 = dma.done [#allocation6], 2048
    $region21: #{tpu_custom_call.1} parent=1 // pred_fallthru
      _
    // Predicated region
    $region22: #{tpu_custom_call.1} parent=1 // pred_check
      _
    $region23: #{tpu_custom_call.1} parent=1 // pred_check_branch
      %50 = sbr.rel (0) target = $region25
    $region24: #{tpu_custom_call.1} parent=1 // pred_region
      %51 = dma.done [#allocation6], 16
    $region25: #{tpu_custom_call.1} parent=1 // pred_fallthru
      _
    %v52 = vld [vmem:[#allocation2] sm:$0xff]
    %v53 = vld [vmem:[#allocation5] sm:$0xff]
    %v54 = vld [vmem:[#allocation5 + $0x8] sm:$0xff]
    %v55 = vld [vmem:[#allocation5 + $0x10] sm:$0xff]
    %v56 = vld [vmem:[#allocation5 + $0x18] sm:$0xff]
    %v57 = vld [vmem:[#allocation5 + $0x20] sm:$0xff]
    %v58 = vld [vmem:[#allocation5 + $0x28] sm:$0xff]
    %v59 = vld [vmem:[#allocation5 + $0x30] sm:$0xff]
    %v60 = vld [vmem:[#allocation5 + $0x38] sm:$0xff]
    %v61 = vld [vmem:[#allocation5 + $0x40] sm:$0xff]
    %v62 = vld [vmem:[#allocation5 + $0x48] sm:$0xff]
    %v63 = vld [vmem:[#allocation5 + $0x50] sm:$0xff]
    %v64 = vld [vmem:[#allocation5 + $0x58] sm:$0xff]
    %v65 = vld [vmem:[#allocation5 + $0x60] sm:$0xff]
    %v66 = vld [vmem:[#allocation5 + $0x68] sm:$0xff]
    %v67 = vld [vmem:[#allocation5 + $0x70] sm:$0xff]
    %v68 = vld [vmem:[#allocation5 + $0x78] sm:$0xff]
    %v69 = vld [vmem:[#allocation7] sm:$0x1]
    %v71 = vlaneseq
    %v72 = vshrl.u32 %v71, 7
    %v73 = vsub.s32 0, %v72
    %v74 = vrot.slane %v69, %v73
    %76 = vmatprep.subr.mxu0 0.0
    %77 = vmatpush1.msra.mxu0 %v53
    %78 = vmatprep.subr.mxu0 0.0
    %79 = vmatpush1.msra.mxu0 %v54
    %80 = vmatprep.subr.mxu0 0.0
    %81 = vmatpush1.msra.mxu0 %v55
    %82 = vmatprep.subr.mxu0 0.0
    %83 = vmatpush1.msra.mxu0 %v56
    %84 = vmatprep.subr.mxu0 0.0
    %85 = vmatpush1.msra.mxu0 %v57
    %86 = vmatprep.subr.mxu0 0.0
    %87 = vmatpush1.msra.mxu0 %v58
    %88 = vmatprep.subr.mxu0 0.0
    %89 = vmatpush1.msra.mxu0 %v59
    %90 = vmatprep.subr.mxu0 0.0
    %91 = vmatpush1.msra.mxu0 %v60
    %92 = vmatprep.subr.mxu0 0.0
    %93 = vmatpush1.msra.mxu0 %v61
    %94 = vmatprep.subr.mxu0 0.0
    %95 = vmatpush1.msra.mxu0 %v62
    %96 = vmatprep.subr.mxu0 0.0
    %97 = vmatpush1.msra.mxu0 %v63
    %98 = vmatprep.subr.mxu0 0.0
    %99 = vmatpush1.msra.mxu0 %v64
    %100 = vmatprep.subr.mxu0 0.0
    %101 = vmatpush1.msra.mxu0 %v65
    %102 = vmatprep.subr.mxu0 0.0
    %103 = vmatpush1.msra.mxu0 %v66
    %104 = vmatprep.subr.mxu0 0.0
    %105 = vmatpush1.msra.mxu0 %v67
    %106 = vmatprep.subr.mxu0 0.0
    %107 = vmatpush1.msra.mxu0 %v68
    %108 = vmatprep.subr.mxu0 0.0
    %109 = vmatpush1.msra.mxu0 0.0
    %110 = vmatprep.subr.mxu0 0.0
    %111 = vmatpush1.msra.mxu0 0.0
    %112 = vmatprep.subr.mxu0 0.0
    %113 = vmatpush1.msra.mxu0 0.0
    %114 = vmatprep.subr.mxu0 0.0
    %115 = vmatpush1.msra.mxu0 0.0
    %116 = vmatprep.subr.mxu0 0.0
    %117 = vmatpush1.msra.mxu0 0.0
    %118 = vmatprep.subr.mxu0 0.0
    %119 = vmatpush1.msra.mxu0 0.0
    %120 = vmatprep.subr.mxu0 0.0
    %121 = vmatpush1.msra.mxu0 0.0
    %122 = vmatprep.subr.mxu0 0.0
    %123 = vmatpush1.msra.mxu0 0.0
    %124 = vmatprep.subr.mxu0 0.0
    %125 = vmatpush1.msra.mxu0 0.0
    %126 = vmatprep.subr.mxu0 0.0
    %127 = vmatpush1.msra.mxu0 0.0
    %128 = vmatprep.subr.mxu0 0.0
    %129 = vmatpush1.msra.mxu0 0.0
    %130 = vmatprep.subr.mxu0 0.0
    %131 = vmatpush1.msra.mxu0 0.0
    %132 = vmatprep.subr.mxu0 0.0
    %133 = vmatpush1.msra.mxu0 0.0
    %134 = vmatprep.subr.mxu0 0.0
    %135 = vmatpush1.msra.mxu0 0.0
    %136 = vmatprep.subr.mxu0 0.0
    %137 = vmatpush1.msra.mxu0 0.0
    %138 = vmatprep.subr.mxu0 0.0
    %139 = vmatpush1.msra.mxu0 0.0
    %140 = vmatprep.mubr.f32.mxu0 0.0
    %141 = vmatmul.mubr.f32.gmra.mrb[0].mxu0 %v52
    %v142 = vpop.f32.mrb[0].mxu0
    %v143 = vadd.f32 %v74, %v142
    %v144 = vpop.f32.mrb[0].mxu0
    %145 = vdwg.mxu0
    %146 = vmax.xlane.f32.xlu0 %v143
    %v147 = vpop.xlane.xlu0 %146
    %v148 = vsub.f32 %v143, %v147
    %v149 = vmul.f32 %v148, 1.442695
    %v150 = vpow.pop %v149
    %151 = vadd.xlane.f32.xlu0 %v150
    %v152 = vpop.xlane.xlu0 %151
    %v153 = vlog2.pop %v152
    %v154 = vmul.f32 %v153, 0.6931472
    %v155 = vsub.f32 %v148, %v154
    %156 = vst [vmem:[#allocation8] sm:$0xff] %v155
    // Predicated region
    $region26: #{tpu_custom_call.1} parent=1 // pred_check
      _
    $region27: #{tpu_custom_call.1} parent=1 // pred_check_branch
      %158 = sbr.rel (0) target = $region29
    $region28: #{tpu_custom_call.1} parent=1 // pred_region
      %s160 = ssub.s32 128, 128
      %161 = vsyncadd [#allocation4], %s160
      %s163 = sshll.u32 [#allocation8], 4
      %s164 = int_to_ptr.vmem [resolvable:$true] %s163
      %166 = dma.vmem_to_hbm [thread:$0]  %s164, 128, %s3, [#allocation4]
    $region29: #{tpu_custom_call.1} parent=1 // pred_fallthru
      _
    // Predicated region
    $region30: #{tpu_custom_call.1} parent=1 // pred_check
      _
    $region31: #{tpu_custom_call.1} parent=1 // pred_check_branch
      %168 = sbr.rel (0) target = $region33
    $region32: #{tpu_custom_call.1} parent=1 // pred_region
      %169 = dma.done [#allocation4], 128
    $region33: #{tpu_custom_call.1} parent=1 // pred_fallthru
      _
    %170 = vsyncpa [#allocation3], 1
    %171 = vsyncpa [#allocation6], 1
    %172 = vsyncpa [#allocation4], 1

</llo_original>
